<compile_context>
chip_gen: v5e
topology: v5e:2x2
jax: 0.10.0
libtpu: 0.0.40
codegen_flags: <defaults>
</compile_context>

<pallas_src>
import math
from functools import partial

import jax
import jax.numpy as jnp
from jax.experimental import pallas as pl
from jax.experimental.pallas import tpu as pltpu

_VMEM_LIMIT = 32 * 1024 * 1024          # explicit scoped-VMEM budget (fits v5e/v6e/v7x)
_ROW_TILE_TARGET = 512                  # rows of (HW, K) per grid step


def _cp(*semantics):
    return pltpu.CompilerParams(dimension_semantics=semantics,
                                vmem_limit_bytes=_VMEM_LIMIT)


def _row_tile(m, target=_ROW_TILE_TARGET):
    """Largest divisor of m that is <= target and a multiple of 8 (else m)."""
    if m <= target:
        return m
    for t in range(target, 7, -1):
        if m % t == 0 and t % 8 == 0:
            return t
    return m


# ----------------------------------------------------------------------------
# Fused matmul kernel: [GN affine] -> [Swish] -> [mask] -> dot -> bias -> adds
# ----------------------------------------------------------------------------
def _make_mm_kernel(has_pre, do_swish, has_mask, has_cb, has_res):
    def kernel(*refs):
        it = iter(refs)
        x_ref = next(it)                                    # (1, T, K)
        scale_ref = next(it) if has_pre else None           # (1, 1, K)
        shift_ref = next(it) if has_pre else None           # (1, 1, K)
        mask_ref = next(it) if has_mask else None           # (1, T, K)
        w_ref = next(it)                                    # (K, N) bf16
        b_ref = next(it)                                    # (1, N) f32
        cb_ref = next(it) if has_cb else None               # (1, 1, N)
        r_ref = next(it) if has_res else None               # (1, T, N)
        o_ref = next(it)                                    # (1, T, N)

        xv = x_ref[0]
        if has_pre or do_swish or has_mask:
            x = xv.astype(jnp.float32)
            if has_pre:                                     # fused GroupNorm affine
                x = x * scale_ref[0] + shift_ref[0]
            if do_swish:                                    # fused Swish
                x = x * jax.nn.sigmoid(x)
            if has_mask:                                    # zero the conv padding taps
                x = x * mask_ref[0].astype(jnp.float32)
            xv = x.astype(jnp.bfloat16)
        else:
            xv = xv.astype(jnp.bfloat16)

        acc = jnp.dot(xv, w_ref[...],                       # single MXU dot (K = 9*Cin)
                      preferred_element_type=jnp.float32)
        acc = acc + b_ref[...]
        if has_cb:                                          # FeatureWiseAffine bias
            acc = acc + cb_ref[0]
        if has_res:                                         # residual add
            acc = acc + r_ref[0].astype(jnp.float32)
        o_ref[...] = acc[None].astype(o_ref.dtype)
    return kernel


def fused_matmul(x, w, bias, *, pre=None, swish=False, mask=None,
                 chan_bias=None, residual=None):
    """x: (B, M, K)  @  w: (K, N) bf16  + bias: (1, N)  ->  (B, M, N) f32."""
    B, M, K = x.shape
    N = w.shape[1]
    T = _row_tile(M)
    grid = (B, M // T)

    args = [x]
    in_specs = [pl.BlockSpec((1, T, K), lambda b, t: (b, t, 0))]
    if pre is not None:
        scale, shift = pre                                   # each (B, K)
        args += [scale.reshape(B, 1, K), shift.reshape(B, 1, K)]
        in_specs += [pl.BlockSpec((1, 1, K), lambda b, t: (b, 0, 0)),
                     pl.BlockSpec((1, 1, K), lambda b, t: (b, 0, 0))]
    if mask is not None:                                     # (1, M, K)
        args.append(mask)
        in_specs.append(pl.BlockSpec((1, T, K), lambda b, t: (0, t, 0)))
    args += [w, bias]
    in_specs += [pl.BlockSpec((K, N), lambda b, t: (0, 0)),
                 pl.BlockSpec((1, N), lambda b, t: (0, 0))]
    if chan_bias is not None:                                # (B, N)
        args.append(chan_bias.reshape(B, 1, N))
        in_specs.append(pl.BlockSpec((1, 1, N), lambda b, t: (b, 0, 0)))
    if residual is not None:                                 # (B, M, N)
        args.append(residual)
        in_specs.append(pl.BlockSpec((1, T, N), lambda b, t: (b, t, 0)))

    kernel = _make_mm_kernel(pre is not None, swish, mask is not None,
                             chan_bias is not None, residual is not None)
    return pl.pallas_call(
        kernel,
        grid=grid,
        in_specs=in_specs,
        out_specs=pl.BlockSpec((1, T, N), lambda b, t: (b, t, 0)),
        out_shape=jax.ShapeDtypeStruct((B, M, N), jnp.float32),
        compiler_params=_cp("parallel", "parallel"),
    )(*args)


def linear(x2d, w, b, *, swish=False):
    """(M, K) @ (K, N) + b as a (1, M, K) batched matmul."""
    return fused_matmul(x2d[None], w, b, swish=swish)[0]


# ----------------------------------------------------------------------------
# GroupNorm statistics kernel -> per-(batch, channel) scale / shift
# ----------------------------------------------------------------------------
def _gn_stats_kernel(x_ref, g_ref, bt_ref, gm_ref, gmt_ref,
                     scale_ref, shift_ref, *, n_per_group, eps):
    x = x_ref[0].astype(jnp.float32)                         # (HW, C)
    s = jnp.sum(x, axis=0, keepdims=True)                    # (1, C)
    ss = jnp.sum(x * x, axis=0, keepdims=True)               # (1, C)
    gs = jnp.dot(s, gm_ref[...], preferred_element_type=jnp.float32)    # (1, G)
    gss = jnp.dot(ss, gm_ref[...], preferred_element_type=jnp.float32)
    mean = gs / n_per_group
    var = jnp.maximum(gss / n_per_group - mean * mean, 0.0)  # clamp: no NaNs
    inv = jax.lax.rsqrt(var + eps)
    mean_c = jnp.dot(mean, gmt_ref[...], preferred_element_type=jnp.float32)
    inv_c = jnp.dot(inv, gmt_ref[...], preferred_element_type=jnp.float32)
    scale = inv_c * g_ref[...]
    shift = bt_ref[...] - mean_c * scale
    scale_ref[...] = scale[None]
    shift_ref[...] = shift[None]


def gn_scale_shift(x, gamma, beta, groups, eps=1e-5):
    """Returns per-channel (scale, shift) so GN(x) == x * scale + shift."""
    B, H, W, C = x.shape
    HW = H * W
    cg = C // groups
    xf = x.reshape(B, HW, C)
    gm = (jnp.arange(C)[:, None] // cg ==
          jnp.arange(groups)[None, :]).astype(jnp.float32)   # (C, G) one-hot
    gmt = gm.T
    kern = partial(_gn_stats_kernel, n_per_group=float(HW * cg), eps=eps)
    scale, shift = pl.pallas_call(
        kern,
        grid=(B,),
        in_specs=[
            pl.BlockSpec((1, HW, C), lambda b: (b, 0, 0)),
            pl.BlockSpec((1, C), lambda b: (0, 0)),
            pl.BlockSpec((1, C), lambda b: (0, 0)),
            pl.BlockSpec((C, groups), lambda b: (0, 0)),
            pl.BlockSpec((groups, C), lambda b: (0, 0)),
        ],
        out_specs=(pl.BlockSpec((1, 1, C), lambda b: (b, 0, 0)),
                   pl.BlockSpec((1, 1, C), lambda b: (b, 0, 0))),
        out_shape=(jax.ShapeDtypeStruct((B, 1, C), jnp.float32),
                   jax.ShapeDtypeStruct((B, 1, C), jnp.float32)),
        compiler_params=_cp("parallel"),
    )(xf, gamma, beta, gm, gmt)
    return scale.reshape(B, C), shift.reshape(B, C)


# ----------------------------------------------------------------------------
# 3x3 convolution (stride 1 / 2), optionally with fused GN+Swish prologue and
# FeatureWiseAffine / residual epilogue.
# ----------------------------------------------------------------------------
def _im2col(x, stride):
    """(B,H,W,Cin) -> (B, Ho*Wo, 9*Cin) patches (tap-major, channel-minor)."""
    B, H, W, Cin = x.shape
    Ho = (H - 1) // stride + 1
    Wo = (W - 1) // stride + 1
    xp = jnp.pad(x, ((0, 0), (1, 1), (1, 1), (0, 0)))
    cols = []
    for dy in range(3):
        for dx in range(3):
            cols.append(xp[:, dy:dy + (Ho - 1) * stride + 1:stride,
                              dx:dx + (Wo - 1) * stride + 1:stride, :])
    p = jnp.concatenate(cols, axis=-1)                       # (B, Ho, Wo, 9*Cin)
    return p.reshape(B, Ho * Wo, 9 * Cin), Ho, Wo


def conv3x3(x, w, b, *, stride=1, pre=None, swish=False,
            chan_bias=None, residual=None):
    """3x3 conv, padding=1.  x:(B,H,W,Cin)  w:(9*Cin,Cout) bf16  b:(1,Cout)."""
    B, H, W, Cin = x.shape
    Cout = w.shape[1]
    patches, Ho, Wo = _im2col(x.astype(jnp.bfloat16), stride)
    mask = None
    if pre is not None:
        # GN affine turns the zero padding into swish(shift); mask it back to 0.
        ones = jnp.ones((1, H, W, Cin), jnp.bfloat16)
        mask, _, _ = _im2col(ones, stride)
        scale, shift = pre
        pre = (jnp.tile(scale, (1, 9)), jnp.tile(shift, (1, 9)))
    out = fused_matmul(patches, w, b, pre=pre, swish=swish, mask=mask,
                       chan_bias=chan_bias, residual=residual)
    return out.reshape(B, Ho, Wo, Cout)


# ----------------------------------------------------------------------------
# Module forwards
# ----------------------------------------------------------------------------
def block(x, bp, groups, *, chan_bias=None, residual=None):
    """GroupNorm -> Swish -> Conv3x3, all fused into one conv kernel call."""
    scale, shift = gn_scale_shift(x, bp['gn_g'], bp['gn_b'], groups)
    return conv3x3(x, bp['conv_w'], bp['conv_b'], pre=(scale, shift),
                   swish=True, chan_bias=chan_bias, residual=residual)


def resnet_block(x, t, p, groups):
    B, H, W, Cin = x.shape
    tb = linear(t, p['noise_w'], p['noise_b'])               # FeatureWiseAffine (B, Cout)
    h = block(x, p['block1'], groups, chan_bias=tb)          # GN+Swish+conv + tb
    if 'res_w' in p:
        res = fused_matmul(x.reshape(B, H * W, Cin), p['res_w'], p['res_b'])
    else:
        res = x.reshape(B, H * W, Cin)
    return block(h, p['block2'], groups, residual=res)       # GN+Swish+conv + residual


def _attn_kernel(q_ref, k_ref, v_ref, ow_ref, ob_ref, xr_ref, o_ref, *, scale):
    q = q_ref[0].astype(jnp.float32)
    k = k_ref[0].astype(jnp.float32)
    s = jax.lax.dot_general(q, k, (((1,), (1,)), ((), ())),
                            preferred_element_type=jnp.float32) * scale
    m = jnp.max(s, axis=-1, keepdims=True)
    p = jnp.exp(s - m)
    p = p * pl.reciprocal(jnp.sum(p, axis=-1, keepdims=True), approx=True)
    attn = jnp.dot(p.astype(jnp.bfloat16), v_ref[0].astype(jnp.bfloat16),
                   preferred_element_type=jnp.float32)
    out = jnp.dot(attn.astype(jnp.bfloat16), ow_ref[...],    # fused output projection
                  preferred_element_type=jnp.float32)
    out = out + ob_ref[...] + xr_ref[0].astype(jnp.float32)  # bias + residual
    o_ref[...] = out[None].astype(o_ref.dtype)


def self_attention(x, p, groups):
    # TODO(synk): tile the key/value axis flash-style for large feature maps.
    B, H, W, C = x.shape
    HW = H * W
    xf = x.reshape(B, HW, C)
    scale, shift = gn_scale_shift(x, p['norm_g'], p['norm_b'], groups)
    qkv = fused_matmul(xf, p['qkv_w'], p['qkv_b'], pre=(scale, shift))  # GN fused
    q, k, v = qkv[:, :, :C], qkv[:, :, C:2 * C], qkv[:, :, 2 * C:]
    out = pl.pallas_call(
        partial(_attn_kernel, scale=1.0 / math.sqrt(C)),
        grid=(B,),
        in_specs=[
            pl.BlockSpec((1, HW, C), lambda b: (b, 0, 0)),
            pl.BlockSpec((1, HW, C), lambda b: (b, 0, 0)),
            pl.BlockSpec((1, HW, C), lambda b: (b, 0, 0)),
            pl.BlockSpec((C, C), lambda b: (0, 0)),
            pl.BlockSpec((1, C), lambda b: (0, 0)),
            pl.BlockSpec((1, HW, C), lambda b: (b, 0, 0)),
        ],
        out_specs=pl.BlockSpec((1, HW, C), lambda b: (b, 0, 0)),
        out_shape=jax.ShapeDtypeStruct((B, HW, C), jnp.float32),
        compiler_params=_cp("parallel"),
    )(q, k, v, p['out_w'], p['out_b'], xf)
    return out.reshape(B, H, W, C)


def rba(x, t, p, groups):
    x = resnet_block(x, t, p['res'], groups)
    if 'attn' in p:
        x = self_attention(x, p['attn'], groups)
    return x


# ----------------------------------------------------------------------------
# Deterministic parameter construction (mirrors UNet.__init__)
# ----------------------------------------------------------------------------
class KeyGen:
    def __init__(self, seed):
        self._key = jax.random.PRNGKey(seed)

    def __call__(self):
        self._key, k = jax.random.split(self._key)
        return k


def init_linear(kg, din, dout):
    w = (jax.random.normal(kg(), (din, dout), jnp.float32)
         / math.sqrt(din)).astype(jnp.bfloat16)
    b = 0.01 * jax.random.normal(kg(), (1, dout), jnp.float32)
    return w, b


def init_conv3(kg, cin, cout):
    w = (jax.random.normal(kg(), (9 * cin, cout), jnp.float32)
         / math.sqrt(9 * cin)).astype(jnp.bfloat16)
    b = 0.01 * jax.random.normal(kg(), (1, cout), jnp.float32)
    return w, b


def init_gn(kg, c):
    g = 1.0 + 0.05 * jax.random.normal(kg(), (1, c), jnp.float32)
    bt = 0.05 * jax.random.normal(kg(), (1, c), jnp.float32)
    return g, bt


def init_block(kg, dim, dim_out):
    gn_g, gn_b = init_gn(kg, dim)
    cw, cb = init_conv3(kg, dim, dim_out)
    return {'gn_g': gn_g, 'gn_b': gn_b, 'conv_w': cw, 'conv_b': cb}


def init_resnet(kg, dim, dim_out, noise_dim):
    p = {}
    p['noise_w'], p['noise_b'] = init_linear(kg, noise_dim, dim_out)
    p['block1'] = init_block(kg, dim, dim_out)
    p['block2'] = init_block(kg, dim_out, dim_out)
    if dim != dim_out:
        p['res_w'], p['res_b'] = init_linear(kg, dim, dim_out)
    return p


def init_attn(kg, c):
    g, bt = init_gn(kg, c)
    qkv_w = (jax.random.normal(kg(), (c, 3 * c), jnp.float32)
             / math.sqrt(c)).astype(jnp.bfloat16)
    qkv_b = jnp.zeros((1, 3 * c), jnp.float32)      # qkv conv has bias=False
    ow, ob = init_linear(kg, c, c)
    return {'norm_g': g, 'norm_b': bt, 'qkv_w': qkv_w, 'qkv_b': qkv_b,
            'out_w': ow, 'out_b': ob}


def init_rba(kg, dim, dim_out, noise_dim, with_attn):
    p = {'res': init_resnet(kg, dim, dim_out, noise_dim)}
    if with_attn:
        p['attn'] = init_attn(kg, dim_out)
    return p


def init_unet(kg, cfg):
    inner = cfg['inner_channel']
    mults = cfg['channel_mults']
    attn_res = cfg['attn_res']
    res_blocks = cfg['res_blocks']
    noise_dim = inner

    params = {}
    w1, b1 = init_linear(kg, inner, inner * 4)
    w2, b2 = init_linear(kg, inner * 4, inner)
    params['noise_mlp'] = {'w1': w1, 'b1': b1, 'w2': w2, 'b2': b2}

    downs = []
    cw, cb = init_conv3(kg, cfg['in_channel'], inner)
    downs.append(('conv', {'w': cw, 'b': cb}))
    pre = inner
    feat_channels = [pre]
    now_res = cfg['image_size']
    for ind in range(len(mults)):
        is_last = ind == len(mults) - 1
        use_attn = now_res in attn_res
        ch = inner * mults[ind]
        for _ in range(res_blocks):
            downs.append(('rba', init_rba(kg, pre, ch, noise_dim, use_attn)))
            feat_channels.append(ch)
            pre = ch
        if not is_last:
            dw, db = init_conv3(kg, pre, pre)
            downs.append(('down', {'w': dw, 'b': db}))
            feat_channels.append(pre)
            now_res //= 2
    params['downs'] = downs

    params['mid'] = [
        ('rba', init_rba(kg, pre, pre, noise_dim, True)),
        ('rba', init_rba(kg, pre, pre, noise_dim, False)),
    ]

    ups = []
    for ind in reversed(range(len(mults))):
        is_last = ind < 1
        use_attn = now_res in attn_res
        ch = inner * mults[ind]
        for _ in range(res_blocks + 1):
            ups.append(('rba', init_rba(kg, pre + feat_channels.pop(), ch,
                                        noise_dim, use_attn)))
            pre = ch
        if not is_last:
            uw, ub = init_conv3(kg, pre, pre)
            ups.append(('up', {'w': uw, 'b': ub}))
            now_res *= 2
    params['ups'] = ups

    params['final'] = init_block(kg, pre, cfg['out_channel'])
    return params


# ----------------------------------------------------------------------------
# Full UNet forward
# ----------------------------------------------------------------------------
def unet_forward(params, x_nchw, time, cfg):
    ng = cfg['norm_groups']
    inner = cfg['inner_channel']
    x = jnp.transpose(x_nchw, (0, 2, 3, 1)).astype(jnp.float32)   # -> NHWC

    # noise_level_mlp: PositionalEncoding -> Linear -> Swish -> Linear
    count = inner // 2
    step = jnp.arange(count, dtype=jnp.float32) / count
    enc = time[:, None] * jnp.exp(-math.log(1e4) * step)[None, :]
    enc = jnp.concatenate([jnp.sin(enc), jnp.cos(enc)], axis=-1)   # (B, inner)
    mp = params['noise_mlp']
    t = linear(enc, mp['w1'], mp['b1'])
    t = linear(t, mp['w2'], mp['b2'], swish=True)   # Swish fused into 2nd linear

    # TODO(synk): dropout==0 in this config, so nn.Dropout is an identity.
    feats = []
    for kind, p in params['downs']:
        if kind == 'conv':
            x = conv3x3(x, p['w'], p['b'])
        elif kind == 'down':
            x = conv3x3(x, p['w'], p['b'], stride=2)
        else:
            x = rba(x, t, p, ng)
        feats.append(x)

    for _, p in params['mid']:
        x = rba(x, t, p, ng)

    for kind, p in params['ups']:
        if kind == 'up':
            # TODO(synk): fold the nearest 2x upsample into the conv index_map.
            x = jnp.repeat(jnp.repeat(x, 2, axis=1), 2, axis=2)
            x = conv3x3(x, p['w'], p['b'])
        else:
            x = rba(jnp.concatenate([x, feats.pop()], axis=-1), t, p, ng)

    fp = params['final']
    x = block(x, fp, ng)                                           # GN+Swish+conv fused
    return jnp.transpose(x, (0, 3, 1, 2))                          # -> NCHW


# ----------------------------------------------------------------------------
if __name__ == "__main__":
    cfg = dict(in_channel=6, out_channel=3, inner_channel=16, norm_groups=8,
               channel_mults=(1, 2), attn_res=(8,), res_blocks=1,
               image_size=16)

    params = init_unet(KeyGen(0), cfg)

    key = jax.random.PRNGKey(0)
    kx, kt = jax.random.split(key)
    x = jax.random.normal(kx, (2, cfg['in_channel'],
                               cfg['image_size'], cfg['image_size']),
                          jnp.float32)
    time = jax.random.uniform(kt, (2,), jnp.float32)

    out = unet_forward(params, x, time, cfg)
    out = jax.block_until_ready(out)
    assert out.shape == (2, cfg['out_channel'],
                         cfg['image_size'], cfg['image_size'])
    assert bool(jnp.all(jnp.isfinite(out)))
    print("KERNEL_OK")
</pallas_src>

<mosaic_0001>
module attributes {stable_mosaic.version = 11 : i64} {
  func.func @kernel(%arg0: i32, %arg1: i32, %arg2: memref<1x2x16xf32, #tpu.memory_space<vmem>>, %arg3: memref<16x64xbf16, #tpu.memory_space<vmem>>, %arg4: memref<1x64xf32, #tpu.memory_space<vmem>>, %arg5: memref<1x2x64xf32, #tpu.memory_space<vmem>>) attributes {dimension_semantics = [#tpu.dimension_semantics<parallel>, #tpu.dimension_semantics<parallel>], iteration_bounds = array<i64: 1, 1>, scalar_prefetch = 0 : i64, scratch_operands = 0 : i64, tpu.core_type = #tpu.core_type<tc>, window_params = [{transform_indices = @transform_0, window_bounds = array<i64: 1, 2, 16>}, {pipeline_mode = #tpu.pipeline_mode<synchronous>, transform_indices = @transform_1, window_bounds = array<i64: 16, 64>}, {pipeline_mode = #tpu.pipeline_mode<synchronous>, transform_indices = @transform_2, window_bounds = array<i64: 1, 64>}, {transform_indices = @transform_3, window_bounds = array<i64: 1, 2, 64>}]} {
    %c0 = arith.constant 0 : index
    %c0_0 = arith.constant 0 : index
    %c0_1 = arith.constant 0 : index
    %0 = vector.load %arg2[%c0, %c0_0, %c0_1] : memref<1x2x16xf32, #tpu.memory_space<vmem>>, vector<1x2x16xf32>
    %1 = vector.shape_cast %0 : vector<1x2x16xf32> to vector<2x16xf32>
    %2 = arith.truncf %1 : vector<2x16xf32> to vector<2x16xbf16>
    %c0_2 = arith.constant 0 : index
    %c0_3 = arith.constant 0 : index
    %3 = vector.load %arg3[%c0_2, %c0_3] : memref<16x64xbf16, #tpu.memory_space<vmem>>, vector<16x64xbf16>
    %cst = arith.constant dense<0.000000e+00> : vector<2x64xf32>
    %4 = tpu.matmul %2, %3, %cst {dimension_numbers = #tpu.dot_dimension_numbers<[1], [0], [0], [1], [0, 0, 1, 1], [], []>} : vector<2x16xbf16>, vector<16x64xbf16>, vector<2x64xf32> -> vector<2x64xf32>
    %c0_4 = arith.constant 0 : index
    %c0_5 = arith.constant 0 : index
    %5 = vector.load %arg4[%c0_4, %c0_5] : memref<1x64xf32, #tpu.memory_space<vmem>>, vector<1x64xf32>
    %6 = vector.broadcast %5 : vector<1x64xf32> to vector<2x64xf32>
    %7 = arith.addf %4, %6 : vector<2x64xf32>
    %8 = vector.shape_cast %7 : vector<2x64xf32> to vector<1x2x64xf32>
    %c0_6 = arith.constant 0 : index
    %c0_7 = arith.constant 0 : index
    %c0_8 = arith.constant 0 : index
    %9 = vector.load %arg5[%c0_6, %c0_7, %c0_8] : memref<1x2x64xf32, #tpu.memory_space<vmem>>, vector<1x2x64xf32>
    tpu.vector_store %arg5[%c0_6, %c0_7, %c0_8], %8 {strides = array<i32>} : memref<1x2x64xf32, #tpu.memory_space<vmem>>, vector<1x2x64xf32>,
    return
  }
  func.func @transform_0(%arg0: i32, %arg1: i32) -> (i32, i32, i32) {
    %c0_i32 = arith.constant 0 : i32
    %c0_i32_0 = arith.constant 0 : i32
    return %arg0, %arg1, %c0_i32 : i32, i32, i32
  }
  func.func @transform_1(%arg0: i32, %arg1: i32) -> (i32, i32) {
    %c0_i32 = arith.constant 0 : i32
    %c0_i32_0 = arith.constant 0 : i32
    %c0_i32_1 = arith.constant 0 : i32
    return %c0_i32, %c0_i32_0 : i32, i32
  }
  func.func @transform_2(%arg0: i32, %arg1: i32) -> (i32, i32) {
    %c0_i32 = arith.constant 0 : i32
    %c0_i32_0 = arith.constant 0 : i32
    %c0_i32_1 = arith.constant 0 : i32
    return %c0_i32, %c0_i32_0 : i32, i32
  }
  func.func @transform_3(%arg0: i32, %arg1: i32) -> (i32, i32, i32) {
    %c0_i32 = arith.constant 0 : i32
    %c0_i32_0 = arith.constant 0 : i32
    return %arg0, %arg1, %c0_i32 : i32, i32, i32
  }
}

</mosaic_0001>

<llo_original>
// kernel: tpu_custom_call.1
$region0: #{tpu_custom_call.1}
  #allocation0 [shape = 'u32[]', space=smem, size = 0x4, offset = 0x4, fixed_abs, tag = 'smem constant byte address 0x4 - core index']
  #allocation1 [shape = 'u32[72,128]{1,0:T(1,128)}', space=vmem, size = 0x9000, scoped, tag = 'internal scratch']
  %s0 = inlined_call_operand.hbm [shape: f32[1,2,16], index: 0, kind: input, shape index: {}]
  %s1 = inlined_call_operand.hbm [shape: bf16[16,64], index: 1, kind: input, shape index: {}]
  %s2 = inlined_call_operand.vmem [shape: f32[1,64], index: 2, kind: input, shape index: {}]
  %s3 = inlined_call_operand.hbm [shape: f32[1,2,64], index: 3, kind: output, shape index: {}]
  %s4 = sld [smem:[#allocation0]]
  $region30: #{tpu_custom_call.1} parent=0
    _
  %s6 = ssub.s32 1, %s4
  %s7 = scalar_select 0, %s6, %s4
  $region1: #{tpu_custom_call.1} parent=0
    #allocation2 [shape = 'u8[1024]{0}', space=vmem, size = 0x400, scoped, tag = 'input window, operand 0, single buffered']
    #allocation3 [shape = 's32[1]{0}', space=sflag, size = 0x4, scoped, tag = 'scoped memory for tpu_custom_call.1']
    #allocation4 [shape = 's32[1]{0}', space=sflag, size = 0x4, scoped, tag = 'scoped memory for tpu_custom_call.1']
    #allocation5 [shape = 'u8[4096]{0}', space=vmem, size = 0x1000, scoped, tag = 'input window, operand 1, single buffered']
    #allocation6 [shape = 's32[1]{0}', space=sflag, size = 0x4, scoped, tag = 'scoped memory for tpu_custom_call.1']
    #allocation7 [shape = 'u8[1024]{0}', space=vmem, size = 0x400, scoped, tag = 'output window, operand 0, single buffered']
    %8 = vsyncpa [#allocation3], 0
    %9 = vsyncpa [#allocation6], 0
    %10 = vsyncpa [#allocation4], 0
    // Predicated region
    $region2: #{tpu_custom_call.1} parent=1 // pred_check
      _
    $region3: #{tpu_custom_call.1} parent=1 // pred_check_branch
      %12 = sbr.rel (0) target = $region5
    $region4: #{tpu_custom_call.1} parent=1 // pred_region
      %14 = vsyncadd [#allocation3], 0
      %s16 = sshll.u32 %s0, 4
      %s17 = int_to_ptr.hbm [resolvable:$true] %s16
      %s18 = sshll.u32 [#allocation2], 4
      %s19 = int_to_ptr.vmem [resolvable:$true] %s18
      %21 = dma.hbm_to_vmem [thread:$0]  %s17, 32, %s19, [#allocation3]
    $region5: #{tpu_custom_call.1} parent=1 // pred_fallthru
      _
    // Predicated region
    $region6: #{tpu_custom_call.1} parent=1 // pred_check
      _
    $region7: #{tpu_custom_call.1} parent=1 // pred_check_branch
      %23 = sbr.rel (0) target = $region9
    $region8: #{tpu_custom_call.1} parent=1 // pred_region
      %25 = vsyncadd [#allocation6], 0
      %s26 = sshll.u32 %s1, 4
      %s27 = int_to_ptr.hbm [resolvable:$true] %s26
      %s28 = sshll.u32 [#allocation5], 4
      %s29 = int_to_ptr.vmem [resolvable:$true] %s28
      %34 = dma.hbm_to_vmem [thread:$0]  %s27, 128, %s29, [#allocation6], 64, 64, 4
    $region9: #{tpu_custom_call.1} parent=1 // pred_fallthru
      _
    // Predicated region
    $region10: #{tpu_custom_call.1} parent=1 // pred_check
      _
    $region11: #{tpu_custom_call.1} parent=1 // pred_check_branch
      %36 = sbr.rel (0) target = $region13
    $region12: #{tpu_custom_call.1} parent=1 // pred_region
      _
    $region13: #{tpu_custom_call.1} parent=1 // pred_fallthru
      _
    // Predicated region
    $region14: #{tpu_custom_call.1} parent=1 // pred_check
      _
    $region15: #{tpu_custom_call.1} parent=1 // pred_check_branch
      %38 = sbr.rel (0) target = $region17
    $region16: #{tpu_custom_call.1} parent=1 // pred_region
      %40 = dma.done [#allocation3], 32
    $region17: #{tpu_custom_call.1} parent=1 // pred_fallthru
      _
    // Predicated region
    $region18: #{tpu_custom_call.1} parent=1 // pred_check
      _
    $region19: #{tpu_custom_call.1} parent=1 // pred_check_branch
      %42 = sbr.rel (0) target = $region21
    $region20: #{tpu_custom_call.1} parent=1 // pred_region
      %44 = dma.done [#allocation6], 128
    $region21: #{tpu_custom_call.1} parent=1 // pred_fallthru
      _
    %v46 = vld [vmem:[#allocation2] sm:$0x3]
    %v47 = vpack.c.bf16 %v46, %v46
    %v48 = vld [vmem:[#allocation5] sm:$0xf]
    %v49 = vld [vmem:[#allocation5 + $0x4] sm:$0xf]
    %v50 = vld [vmem:[%s2] sm:$0x1]
    %v52 = vperm.slane %v50, 0
    %v56 = vunpack.c.l.b16 %v48
    %v57 = vunpack.c.l.b16 %v49
    %v58 = vpack.c.b16 %v57, %v56
    %vm60 = vcmask 130048
    %v62 = vsel %vm60, %v47, 0
    %64 = vmatpush.bf16.msra.mxu0 0
    %65 = vmatpush.bf16.msra.mxu0 0
    %66 = vmatpush.bf16.msra.mxu0 0
    %67 = vmatpush.bf16.msra.mxu0 0
    %68 = vmatpush.bf16.msra.mxu0 0
    %69 = vmatpush.bf16.msra.mxu0 0
    %70 = vmatpush.bf16.msra.mxu0 0
    %71 = vmatpush.bf16.msra.mxu0 %v58
    %72 = vmatmul.bf16.gmra.mxu0 %v62
    %v73 = vpop.f32.mrf.mxu0
    %v74 = vadd.f32 %v52, %v73
    %v75 = vpop.f32.mrf.mxu0
    %76 = vdwg.mxu0
    %vm77 = vcmask 517120
    %78 = vst.msk [vmem:[#allocation7] sm:$0x3] %vm77, %v74
    // Predicated region
    $region22: #{tpu_custom_call.1} parent=1 // pred_check
      _
    $region23: #{tpu_custom_call.1} parent=1 // pred_check_branch
      %80 = sbr.rel (0) target = $region25
    $region24: #{tpu_custom_call.1} parent=1 // pred_region
      %82 = vsyncadd [#allocation4], 0
      %s84 = sshll.u32 [#allocation7], 4
      %s85 = int_to_ptr.vmem [resolvable:$true] %s84
      %s86 = sshll.u32 %s3, 4
      %s87 = int_to_ptr.hbm [resolvable:$true] %s86
      %89 = dma.vmem_to_hbm [thread:$0]  %s85, 32, %s87, [#allocation4]
    $region25: #{tpu_custom_call.1} parent=1 // pred_fallthru
      _
    // Predicated region
    $region26: #{tpu_custom_call.1} parent=1 // pred_check
      _
    $region27: #{tpu_custom_call.1} parent=1 // pred_check_branch
      %91 = sbr.rel (0) target = $region29
    $region28: #{tpu_custom_call.1} parent=1 // pred_region
      %93 = dma.done [#allocation4], 32
    $region29: #{tpu_custom_call.1} parent=1 // pred_fallthru
      _
    %94 = vsyncpa [#allocation3], 1
    %95 = vsyncpa [#allocation6], 1
    %96 = vsyncpa [#allocation4], 1

</llo_original>
